<compile_context>
chip_gen: v6e
topology: v6e:2x2x1
jax: 0.10.0
libtpu: 0.0.40
codegen_flags: <defaults>
</compile_context>

<pallas_src>
import functools

import jax
import jax.numpy as jnp
from jax.experimental import pallas as pl
from jax.experimental.pallas import tpu as pltpu


# ---------------------------------------------------------------------------
# Kernel: one batch block (TB parameter sets) per grid step.
# ---------------------------------------------------------------------------
def _bfm_loss_kernel(w_ref, basis_ref, tar_ref, rts_ref, out_ref, *,
                     n_valid, n_pad):
    # w_ref:     (TB, K+1)   VMEM   rows = [id_w ; exp_w ; 1.0]
    # basis_ref: (K+1, 3*Np) VMEM   rows = id/exp bases + mean row, lanes = points
    # tar_ref:   (1, 3*Np)   VMEM   [tar_x | tar_y | tar_z]
    # rts_ref:   (TB, 16)    VMEM   per row: [R.flatten()(9), t(3), s(1), pad(3)]
    # out_ref:   (TB, 1)     VMEM   per-row loss

    # One lane-dense MXU contraction (mean folded in via the trailing 1.0):
    #   bfm[b, c*Np + n] = sum_k w[b,k] * basis[k, c*Np + n]
    bfm = jnp.dot(w_ref[...], basis_ref[...],
                  preferred_element_type=jnp.float32)            # (TB, 3*Np)

    s_col = rts_ref[:, 12:13]                                    # (TB, 1)

    sq = None
    for c in range(3):
        # Fold s into R per row (column broadcasts across the lane axis).
        sr0 = rts_ref[:, 3 * c + 0:3 * c + 1] * s_col            # (TB, 1)
        sr1 = rts_ref[:, 3 * c + 1:3 * c + 2] * s_col
        sr2 = rts_ref[:, 3 * c + 2:3 * c + 3] * s_col
        t_c = rts_ref[:, 9 + c:10 + c]                           # (TB, 1)
        # Lane-aligned static slices (Np % 128 == 0).
        pred = (sr0 * bfm[:, 0 * n_pad:1 * n_pad]
                + sr1 * bfm[:, 1 * n_pad:2 * n_pad]
                + sr2 * bfm[:, 2 * n_pad:3 * n_pad]
                + t_c)                                           # (TB, Np)
        d = pred - tar_ref[:, c * n_pad:(c + 1) * n_pad]         # (TB, Np)
        sq = d * d if sq is None else sq + d * d

    total = jnp.sum(sq, axis=1, keepdims=True)                   # (TB, 1)

    # Padded lanes (basis/mean/tar zero-padded) contribute exactly t_c^2 each;
    # subtract that closed-form correction instead of masking three times.
    if n_valid != n_pad:
        t0 = rts_ref[:, 9:10]
        t1 = rts_ref[:, 10:11]
        t2 = rts_ref[:, 11:12]
        pad_corr = jnp.float32(n_pad - n_valid) * (t0 * t0 + t1 * t1 + t2 * t2)
        total = jnp.maximum(total - pad_corr, 0.0)

    out_ref[...] = jnp.sqrt(total)


# ---------------------------------------------------------------------------
# One-time layout prep (outside the per-call hot path)
# ---------------------------------------------------------------------------
def _pad_n(x, n_pad):
    n = x.shape[0]
    if n_pad == n:
        return x
    pad = [(0, n_pad - n)] + [(0, 0)] * (x.ndim - 1)
    return jnp.pad(x, pad)


def prepare_bfm_geometry(xyz_id_base, xyz_exp_base, xyz_mean, xyz_tar):
    """Torch-style (N,3,K)/(N,3,1) -> lane-dense kernel layout, padded to 128.

    Returns:
      basis:    (K+1, 3*Np) f32  -- id+exp bases with the mean folded in as the
                                    last contraction row.
      tar_flat: (1, 3*Np)   f32
      n, n_pad: python ints
    """
    n = xyz_id_base.shape[0]
    n_pad = max(128, ((n + 127) // 128) * 128)

    base = jnp.concatenate([xyz_id_base, xyz_exp_base], axis=-1)      # (N, 3, K)
    base = _pad_n(base.astype(jnp.float32), n_pad)                    # (Np, 3, K)
    k_tot = base.shape[2]
    basis = jnp.transpose(base, (2, 1, 0)).reshape(k_tot, 3 * n_pad)  # (K, 3*Np)

    mean = _pad_n(xyz_mean.astype(jnp.float32)[..., 0], n_pad)        # (Np, 3)
    mean_row = jnp.transpose(mean, (1, 0)).reshape(1, 3 * n_pad)      # (1, 3*Np)
    basis = jnp.concatenate([basis, mean_row], axis=0)                # (K+1, 3*Np)

    tar = _pad_n(xyz_tar.astype(jnp.float32)[..., 0], n_pad)          # (Np, 3)
    tar_flat = jnp.transpose(tar, (1, 0)).reshape(1, 3 * n_pad)       # (1, 3*Np)
    return basis, tar_flat, n, n_pad


def prepare_bfm_params(id_w, exp_w, R, t, s):
    """Single parameter set -> one (1, K+1) weight row and one (1, 16) R/t/s row."""
    w = jnp.concatenate([
        jnp.asarray(id_w, jnp.float32).reshape(-1),
        jnp.asarray(exp_w, jnp.float32).reshape(-1),
        jnp.ones((1,), jnp.float32),                       # mean row weight
    ]).reshape(1, -1)
    rts = jnp.concatenate([
        jnp.asarray(R, jnp.float32).reshape(-1),           # 9
        jnp.asarray(t, jnp.float32).reshape(-1),           # 3
        jnp.asarray(s, jnp.float32).reshape(-1),           # 1
        jnp.zeros((3,), jnp.float32),                      # pad to 16
    ]).reshape(1, 16)
    return w, rts


# ---------------------------------------------------------------------------
# Batched wrapper: grid over batch blocks; basis/target DMA'd once & resident.
# ---------------------------------------------------------------------------
def bfm_to_468_loss_batched(basis, tar_flat, w, rts, n_valid, n_pad, *, tb=8):
    """Evaluate the loss for B parameter sets against one fixed geometry.

    basis:    (K+1, 3*Np)   tar_flat: (1, 3*Np)
    w:        (B, K+1)      rts:      (B, 16)
    Returns (B,) f32 losses.
    """
    b = w.shape[0]
    kp1, np3 = basis.shape
    b_pad = max(tb, ((b + tb - 1) // tb) * tb)
    if b_pad != b:
        w = jnp.pad(w, ((0, b_pad - b), (0, 0)))
        rts = jnp.pad(rts, ((0, b_pad - b), (0, 0)))

    kernel = functools.partial(_bfm_loss_kernel, n_valid=n_valid, n_pad=n_pad)

    flops = 2 * b_pad * kp1 * np3 + 12 * b_pad * np3
    bytes_accessed = 4 * (basis.size + tar_flat.size + w.size + rts.size + b_pad)

    out = pl.pallas_call(
        kernel,
        out_shape=jax.ShapeDtypeStruct((b_pad, 1), jnp.float32),
        grid=(b_pad // tb,),
        in_specs=[
            pl.BlockSpec((tb, kp1), lambda i: (i, 0)),     # w: per-block
            pl.BlockSpec((kp1, np3), lambda i: (0, 0)),    # basis: resident
            pl.BlockSpec((1, np3), lambda i: (0, 0)),      # target: resident
            pl.BlockSpec((tb, 16), lambda i: (i, 0)),      # packed R/t/s
        ],
        out_specs=pl.BlockSpec((tb, 1), lambda i: (i, 0)),
        compiler_params=pltpu.CompilerParams(
            dimension_semantics=("parallel",)),            # v7x: shard over 2 TCs
        cost_estimate=pl.CostEstimate(
            flops=flops, transcendentals=0, bytes_accessed=bytes_accessed),
    )(w, basis, tar_flat, rts)
    return out[:b, 0]


def bfm_to_468_loss(basis, tar_flat, w_row, rts_row, n_valid, n_pad):
    """Single parameter set (module-equivalent forward): returns a scalar."""
    return bfm_to_468_loss_batched(basis, tar_flat, w_row, rts_row,
                                   n_valid, n_pad)[0]


# ---------------------------------------------------------------------------
# Pure-JAX reference (mirrors the PyTorch forward exactly)
# ---------------------------------------------------------------------------
def bfm_to_468_loss_ref(xyz_id_base, xyz_exp_base, xyz_mean, xyz_tar,
                        id_w, exp_w, R, t, s):
    bfm = xyz_id_base @ id_w + xyz_exp_base @ exp_w + xyz_mean       # (N, 3, 1)
    bfm = jnp.squeeze(bfm)                                           # (N, 3)
    xyz_468 = R @ bfm.T * s + t.reshape(3, -1)                       # (3, N)
    return jnp.sqrt(jnp.sum((xyz_468 - jnp.squeeze(xyz_tar).T) ** 2))


if __name__ == "__main__":
    # Real landmark count (468) to exercise the padded-lane path; small bases.
    N, shapeDim, expressionDim = 468, 32, 16
    B = 8  # batched parameter sets evaluated in one kernel call

    key = jax.random.PRNGKey(0)
    keys = jax.random.split(key, 4 + 5 * B)

    # Fixed geometry (deterministic)
    xyz_id_base = jax.random.normal(keys[0], (N, 3, shapeDim), jnp.float32)
    xyz_exp_base = jax.random.normal(keys[1], (N, 3, expressionDim), jnp.float32)
    xyz_mean = jax.random.normal(keys[2], (N, 3, 1), jnp.float32)
    xyz_tar = jax.random.normal(keys[3], (N, 3, 1), jnp.float32)

    basis, tar_flat, n_valid, n_pad = prepare_bfm_geometry(
        xyz_id_base, xyz_exp_base, xyz_mean, xyz_tar)

    # B parameter sets; row 0 matches the module's __init__ exactly.
    param_sets = []
    for bi in range(B):
        k1, k2, k3, k4, k5 = keys[4 + 5 * bi:4 + 5 * (bi + 1)]
        id_w = jax.random.uniform(k1, (shapeDim, 1), jnp.float32)      # torch.rand
        exp_w = jax.random.uniform(k2, (expressionDim, 1), jnp.float32)
        if bi == 0:
            R = jnp.eye(3, dtype=jnp.float32)
            t = jnp.array([[1e-5], [0.0], [0.0]], dtype=jnp.float32)
            s = jnp.array([1.0], dtype=jnp.float32)
        else:
            R = (jnp.eye(3, dtype=jnp.float32)
                 + 0.1 * jax.random.normal(k3, (3, 3), jnp.float32))
            t = 0.5 * jax.random.normal(k4, (3, 1), jnp.float32)
            s = 1.0 + 0.1 * jax.random.normal(k5, (1,), jnp.float32)
        param_sets.append((id_w, exp_w, R, t, s))

    rows = [prepare_bfm_params(*p) for p in param_sets]
    w = jnp.concatenate([r[0] for r in rows], axis=0)    # (B, K+1)
    rts = jnp.concatenate([r[1] for r in rows], axis=0)  # (B, 16)

    losses = bfm_to_468_loss_batched(basis, tar_flat, w, rts, n_valid, n_pad)
    losses = jax.block_until_ready(losses)

    refs = jnp.stack([
        bfm_to_468_loss_ref(xyz_id_base, xyz_exp_base, xyz_mean, xyz_tar, *p)
        for p in param_sets])
    assert jnp.allclose(losses, refs, rtol=1e-4, atol=1e-4), (losses, refs)
    print("KERNEL_OK")
</pallas_src>

<mosaic_0001>
module attributes {stable_mosaic.version = 11 : i64} {
  func.func @_bfm_loss_kernel(%arg0: i32, %arg1: memref<8x49xf32, #tpu.memory_space<vmem>>, %arg2: memref<49x1536xf32, #tpu.memory_space<vmem>>, %arg3: memref<1x1536xf32, #tpu.memory_space<vmem>>, %arg4: memref<8x16xf32, #tpu.memory_space<vmem>>, %arg5: memref<8x1xf32, #tpu.memory_space<vmem>>) attributes {dimension_semantics = [#tpu.dimension_semantics<parallel>], iteration_bounds = array<i64: 1>, scalar_prefetch = 0 : i64, scratch_operands = 0 : i64, tpu.core_type = #tpu.core_type<tc>, window_params = [{transform_indices = @transform_0, window_bounds = array<i64: 8, 49>}, {pipeline_mode = #tpu.pipeline_mode<synchronous>, transform_indices = @transform_1, window_bounds = array<i64: 49, 1536>}, {pipeline_mode = #tpu.pipeline_mode<synchronous>, transform_indices = @transform_2, window_bounds = array<i64: 1, 1536>}, {transform_indices = @transform_3, window_bounds = array<i64: 8, 16>}, {transform_indices = @transform_4, window_bounds = array<i64: 8, 1>}]} {
    %c0 = arith.constant 0 : index
    %c0_0 = arith.constant 0 : index
    %0 = vector.load %arg1[%c0, %c0_0] : memref<8x49xf32, #tpu.memory_space<vmem>>, vector<8x49xf32>
    %c0_1 = arith.constant 0 : index
    %c0_2 = arith.constant 0 : index
    %1 = vector.load %arg2[%c0_1, %c0_2] : memref<49x1536xf32, #tpu.memory_space<vmem>>, vector<49x1536xf32>
    %cst = arith.constant dense<0.000000e+00> : vector<8x1536xf32>
    %2 = tpu.matmul %0, %1, %cst {dimension_numbers = #tpu.dot_dimension_numbers<[1], [0], [0], [1], [0, 0, 1, 1], [], []>} : vector<8x49xf32>, vector<49x1536xf32>, vector<8x1536xf32> -> vector<8x1536xf32>
    %c0_3 = arith.constant 0 : index
    %c12 = arith.constant 12 : index
    %3 = vector.load %arg4[%c0_3, %c12] : memref<8x16xf32, #tpu.memory_space<vmem>>, vector<8x1xf32>
    %c0_4 = arith.constant 0 : index
    %c0_5 = arith.constant 0 : index
    %4 = vector.load %arg4[%c0_4, %c0_5] : memref<8x16xf32, #tpu.memory_space<vmem>>, vector<8x1xf32>
    %5 = arith.mulf %4, %3 : vector<8x1xf32>
    %c0_6 = arith.constant 0 : index
    %c1 = arith.constant 1 : index
    %6 = vector.load %arg4[%c0_6, %c1] : memref<8x16xf32, #tpu.memory_space<vmem>>, vector<8x1xf32>
    %7 = arith.mulf %6, %3 : vector<8x1xf32>
    %c0_7 = arith.constant 0 : index
    %c2 = arith.constant 2 : index
    %8 = vector.load %arg4[%c0_7, %c2] : memref<8x16xf32, #tpu.memory_space<vmem>>, vector<8x1xf32>
    %9 = arith.mulf %8, %3 : vector<8x1xf32>
    %c0_8 = arith.constant 0 : index
    %c9 = arith.constant 9 : index
    %10 = vector.load %arg4[%c0_8, %c9] : memref<8x16xf32, #tpu.memory_space<vmem>>, vector<8x1xf32>
    %11 = vector.extract_strided_slice %2 {offsets = [0, 0], sizes = [8, 512], strides = [1, 1]} : vector<8x1536xf32> to vector<8x512xf32>
    %12 = vector.broadcast %5 : vector<8x1xf32> to vector<8x512xf32>
    %13 = arith.mulf %12, %11 : vector<8x512xf32>
    %14 = vector.extract_strided_slice %2 {offsets = [0, 512], sizes = [8, 512], strides = [1, 1]} : vector<8x1536xf32> to vector<8x512xf32>
    %15 = vector.broadcast %7 : vector<8x1xf32> to vector<8x512xf32>
    %16 = arith.mulf %15, %14 : vector<8x512xf32>
    %17 = arith.addf %13, %16 : vector<8x512xf32>
    %18 = vector.extract_strided_slice %2 {offsets = [0, 1024], sizes = [8, 512], strides = [1, 1]} : vector<8x1536xf32> to vector<8x512xf32>
    %19 = vector.broadcast %9 : vector<8x1xf32> to vector<8x512xf32>
    %20 = arith.mulf %19, %18 : vector<8x512xf32>
    %21 = arith.addf %17, %20 : vector<8x512xf32>
    %22 = vector.broadcast %10 : vector<8x1xf32> to vector<8x512xf32>
    %23 = arith.addf %21, %22 : vector<8x512xf32>
    %c0_9 = arith.constant 0 : index
    %c0_10 = arith.constant 0 : index
    %24 = vector.load %arg3[%c0_9, %c0_10] : memref<1x1536xf32, #tpu.memory_space<vmem>>, vector<1x512xf32>
    %25 = vector.broadcast %24 : vector<1x512xf32> to vector<8x512xf32>
    %26 = arith.subf %23, %25 : vector<8x512xf32>
    %27 = arith.mulf %26, %26 : vector<8x512xf32>
    %c0_11 = arith.constant 0 : index
    %c3 = arith.constant 3 : index
    %28 = vector.load %arg4[%c0_11, %c3] : memref<8x16xf32, #tpu.memory_space<vmem>>, vector<8x1xf32>
    %29 = arith.mulf %28, %3 : vector<8x1xf32>
    %c0_12 = arith.constant 0 : index
    %c4 = arith.constant 4 : index
    %30 = vector.load %arg4[%c0_12, %c4] : memref<8x16xf32, #tpu.memory_space<vmem>>, vector<8x1xf32>
    %31 = arith.mulf %30, %3 : vector<8x1xf32>
    %c0_13 = arith.constant 0 : index
    %c5 = arith.constant 5 : index
    %32 = vector.load %arg4[%c0_13, %c5] : memref<8x16xf32, #tpu.memory_space<vmem>>, vector<8x1xf32>
    %33 = arith.mulf %32, %3 : vector<8x1xf32>
    %c0_14 = arith.constant 0 : index
    %c10 = arith.constant 10 : index
    %34 = vector.load %arg4[%c0_14, %c10] : memref<8x16xf32, #tpu.memory_space<vmem>>, vector<8x1xf32>
    %35 = vector.extract_strided_slice %2 {offsets = [0, 0], sizes = [8, 512], strides = [1, 1]} : vector<8x1536xf32> to vector<8x512xf32>
    %36 = vector.broadcast %29 : vector<8x1xf32> to vector<8x512xf32>
    %37 = arith.mulf %36, %35 : vector<8x512xf32>
    %38 = vector.extract_strided_slice %2 {offsets = [0, 512], sizes = [8, 512], strides = [1, 1]} : vector<8x1536xf32> to vector<8x512xf32>
    %39 = vector.broadcast %31 : vector<8x1xf32> to vector<8x512xf32>
    %40 = arith.mulf %39, %38 : vector<8x512xf32>
    %41 = arith.addf %37, %40 : vector<8x512xf32>
    %42 = vector.extract_strided_slice %2 {offsets = [0, 1024], sizes = [8, 512], strides = [1, 1]} : vector<8x1536xf32> to vector<8x512xf32>
    %43 = vector.broadcast %33 : vector<8x1xf32> to vector<8x512xf32>
    %44 = arith.mulf %43, %42 : vector<8x512xf32>
    %45 = arith.addf %41, %44 : vector<8x512xf32>
    %46 = vector.broadcast %34 : vector<8x1xf32> to vector<8x512xf32>
    %47 = arith.addf %45, %46 : vector<8x512xf32>
    %c0_15 = arith.constant 0 : index
    %c512 = arith.constant 512 : index
    %48 = vector.load %arg3[%c0_15, %c512] : memref<1x1536xf32, #tpu.memory_space<vmem>>, vector<1x512xf32>
    %49 = vector.broadcast %48 : vector<1x512xf32> to vector<8x512xf32>
    %50 = arith.subf %47, %49 : vector<8x512xf32>
    %51 = arith.mulf %50, %50 : vector<8x512xf32>
    %52 = arith.addf %27, %51 : vector<8x512xf32>
    %c0_16 = arith.constant 0 : index
    %c6 = arith.constant 6 : index
    %53 = vector.load %arg4[%c0_16, %c6] : memref<8x16xf32, #tpu.memory_space<vmem>>, vector<8x1xf32>
    %54 = arith.mulf %53, %3 : vector<8x1xf32>
    %c0_17 = arith.constant 0 : index
    %c7 = arith.constant 7 : index
    %55 = vector.load %arg4[%c0_17, %c7] : memref<8x16xf32, #tpu.memory_space<vmem>>, vector<8x1xf32>
    %56 = arith.mulf %55, %3 : vector<8x1xf32>
    %c0_18 = arith.constant 0 : index
    %c8 = arith.constant 8 : index
    %57 = vector.load %arg4[%c0_18, %c8] : memref<8x16xf32, #tpu.memory_space<vmem>>, vector<8x1xf32>
    %58 = arith.mulf %57, %3 : vector<8x1xf32>
    %c0_19 = arith.constant 0 : index
    %c11 = arith.constant 11 : index
    %59 = vector.load %arg4[%c0_19, %c11] : memref<8x16xf32, #tpu.memory_space<vmem>>, vector<8x1xf32>
    %60 = vector.extract_strided_slice %2 {offsets = [0, 0], sizes = [8, 512], strides = [1, 1]} : vector<8x1536xf32> to vector<8x512xf32>
    %61 = vector.broadcast %54 : vector<8x1xf32> to vector<8x512xf32>
    %62 = arith.mulf %61, %60 : vector<8x512xf32>
    %63 = vector.extract_strided_slice %2 {offsets = [0, 512], sizes = [8, 512], strides = [1, 1]} : vector<8x1536xf32> to vector<8x512xf32>
    %64 = vector.broadcast %56 : vector<8x1xf32> to vector<8x512xf32>
    %65 = arith.mulf %64, %63 : vector<8x512xf32>
    %66 = arith.addf %62, %65 : vector<8x512xf32>
    %67 = vector.extract_strided_slice %2 {offsets = [0, 1024], sizes = [8, 512], strides = [1, 1]} : vector<8x1536xf32> to vector<8x512xf32>
    %68 = vector.broadcast %58 : vector<8x1xf32> to vector<8x512xf32>
    %69 = arith.mulf %68, %67 : vector<8x512xf32>
    %70 = arith.addf %66, %69 : vector<8x512xf32>
    %71 = vector.broadcast %59 : vector<8x1xf32> to vector<8x512xf32>
    %72 = arith.addf %70, %71 : vector<8x512xf32>
    %c0_20 = arith.constant 0 : index
    %c1024 = arith.constant 1024 : index
    %73 = vector.load %arg3[%c0_20, %c1024] : memref<1x1536xf32, #tpu.memory_space<vmem>>, vector<1x512xf32>
    %74 = vector.broadcast %73 : vector<1x512xf32> to vector<8x512xf32>
    %75 = arith.subf %72, %74 : vector<8x512xf32>
    %76 = arith.mulf %75, %75 : vector<8x512xf32>
    %77 = arith.addf %52, %76 : vector<8x512xf32>
    %cst_21 = arith.constant dense<0.000000e+00> : vector<8xf32>
    %78 = vector.multi_reduction <add>, %77, %cst_21 [1] : vector<8x512xf32> to vector<8xf32>
    %79 = vector.shape_cast %78 : vector<8xf32> to vector<8x1xf32>
    %c0_22 = arith.constant 0 : index
    %c9_23 = arith.constant 9 : index
    %80 = vector.load %arg4[%c0_22, %c9_23] : memref<8x16xf32, #tpu.memory_space<vmem>>, vector<8x1xf32>
    %c0_24 = arith.constant 0 : index
    %c10_25 = arith.constant 10 : index
    %81 = vector.load %arg4[%c0_24, %c10_25] : memref<8x16xf32, #tpu.memory_space<vmem>>, vector<8x1xf32>
    %c0_26 = arith.constant 0 : index
    %c11_27 = arith.constant 11 : index
    %82 = vector.load %arg4[%c0_26, %c11_27] : memref<8x16xf32, #tpu.memory_space<vmem>>, vector<8x1xf32>
    %83 = arith.mulf %80, %80 : vector<8x1xf32>
    %84 = arith.mulf %81, %81 : vector<8x1xf32>
    %85 = arith.addf %83, %84 : vector<8x1xf32>
    %86 = arith.mulf %82, %82 : vector<8x1xf32>
    %87 = arith.addf %85, %86 : vector<8x1xf32>
    %cst_28 = arith.constant 4.400000e+01 : f32
    %88 = vector.broadcast %cst_28 : f32 to vector<8x1xf32>
    %89 = arith.mulf %88, %87 : vector<8x1xf32>
    %90 = arith.subf %79, %89 : vector<8x1xf32>
    %cst_29 = arith.constant 0.000000e+00 : f32
    %91 = vector.broadcast %cst_29 : f32 to vector<8x1xf32>
    %92 = arith.maximumf %90, %91 : vector<8x1xf32>
    %93 = math.sqrt %92 : vector<8x1xf32>
    %c0_30 = arith.constant 0 : index
    %c0_31 = arith.constant 0 : index
    %94 = vector.load %arg5[%c0_30, %c0_31] : memref<8x1xf32, #tpu.memory_space<vmem>>, vector<8x1xf32>
    tpu.vector_store %arg5[%c0_30, %c0_31], %93 {strides = array<i32>} : memref<8x1xf32, #tpu.memory_space<vmem>>, vector<8x1xf32>,
    return
  }
  func.func @transform_0(%arg0: i32) -> (i32, i32) {
    %c0_i32 = arith.constant 0 : i32
    %c0_i32_0 = arith.constant 0 : i32
    return %arg0, %c0_i32 : i32, i32
  }
  func.func @transform_1(%arg0: i32) -> (i32, i32) {
    %c0_i32 = arith.constant 0 : i32
    %c0_i32_0 = arith.constant 0 : i32
    %c0_i32_1 = arith.constant 0 : i32
    return %c0_i32, %c0_i32_0 : i32, i32
  }
  func.func @transform_2(%arg0: i32) -> (i32, i32) {
    %c0_i32 = arith.constant 0 : i32
    %c0_i32_0 = arith.constant 0 : i32
    %c0_i32_1 = arith.constant 0 : i32
    return %c0_i32, %c0_i32_0 : i32, i32
  }
  func.func @transform_3(%arg0: i32) -> (i32, i32) {
    %c0_i32 = arith.constant 0 : i32
    %c0_i32_0 = arith.constant 0 : i32
    return %arg0, %c0_i32 : i32, i32
  }
  func.func @transform_4(%arg0: i32) -> (i32, i32) {
    %c0_i32 = arith.constant 0 : i32
    %c0_i32_0 = arith.constant 0 : i32
    return %arg0, %c0_i32 : i32, i32
  }
}

</mosaic_0001>

<llo_original>
// kernel: tpu_custom_call.1
$region0: #{tpu_custom_call.1}
  #allocation0 [shape = 'u32[]', space=smem, size = 0x4, offset = 0x4, fixed_abs, tag = 'smem constant byte address 0x4 - core index']
  #allocation1 [shape = 'u32[144,128]{1,0:T(1,128)}', space=vmem, size = 0x12000, scoped, tag = 'internal scratch']
  %s0 = inlined_call_operand.hbm [shape: f32[8,49], index: 0, kind: input, shape index: {}]
  %s1 = inlined_call_operand.hbm [shape: f32[49,1536], index: 1, kind: input, shape index: {}]
  %s2 = inlined_call_operand.hbm [shape: f32[1,1536], index: 2, kind: input, shape index: {}]
  %s3 = inlined_call_operand.hbm [shape: f32[8,16], index: 3, kind: input, shape index: {}]
  %s4 = inlined_call_operand.vmem [shape: f32[8,1], index: 4, kind: output, shape index: {}]
  %s5 = sld [smem:[#allocation0]]
  $region42: #{tpu_custom_call.1} parent=0
    _
  %s7 = ssub.s32 1, %s5
  %s8 = scalar_select 0, %s7, %s5
  $region1: #{tpu_custom_call.1} parent=0
    #allocation2 [shape = 'u8[4096]{0}', space=vmem, size = 0x1000, scoped, tag = 'input window, operand 0, single buffered']
    #allocation3 [shape = 's32[1]{0}', space=sflag, size = 0x4, scoped, tag = 'scoped memory for tpu_custom_call.1']
    #allocation4 [shape = 'u8[344064]{0}', space=vmem, size = 0x54000, scoped, tag = 'input window, operand 1, single buffered']
    #allocation5 [shape = 's32[1]{0}', space=sflag, size = 0x4, scoped, tag = 'scoped memory for tpu_custom_call.1']
    #allocation6 [shape = 'u8[6144]{0}', space=vmem, size = 0x1800, scoped, tag = 'input window, operand 2, single buffered']
    #allocation7 [shape = 'u8[4096]{0}', space=vmem, size = 0x1000, scoped, tag = 'input window, operand 3, single buffered']
    #allocation8 [shape = 's32[1]{0}', space=sflag, size = 0x4, scoped, tag = 'scoped memory for tpu_custom_call.1']
    %9 = vsyncpa [#allocation3], 0
    %10 = vsyncpa [#allocation5], 0
    %11 = vsyncpa [#allocation8], 0
    // Predicated region
    $region2: #{tpu_custom_call.1} parent=1 // pred_check
      _
    $region3: #{tpu_custom_call.1} parent=1 // pred_check_branch
      %13 = sbr.rel (0) target = $region5
    $region4: #{tpu_custom_call.1} parent=1 // pred_region
      %s15 = ssub.s32 128, 128
      %16 = vsyncadd [#allocation3], %s15
      %s18 = sshll.u32 [#allocation2], 4
      %s19 = int_to_ptr.vmem [resolvable:$true] %s18
      %21 = dma.hbm_to_vmem [thread:$0]  %s0, 128, %s19, [#allocation3]
    $region5: #{tpu_custom_call.1} parent=1 // pred_fallthru
      _
    // Predicated region
    $region6: #{tpu_custom_call.1} parent=1 // pred_check
      _
    $region7: #{tpu_custom_call.1} parent=1 // pred_check_branch
      %23 = sbr.rel (0) target = $region9
    $region8: #{tpu_custom_call.1} parent=1 // pred_region
      %s25 = ssub.s32 10752, 10752
      %26 = vsyncadd [#allocation5], %s25
      %s27 = sshll.u32 [#allocation4], 4
      %s28 = int_to_ptr.vmem [resolvable:$true] %s27
      %33 = dma.hbm_to_vmem [thread:$0]  %s1, 10752, %s28, [#allocation5], 1536, 1536, 96
    $region9: #{tpu_custom_call.1} parent=1 // pred_fallthru
      _
    // Predicated region
    $region10: #{tpu_custom_call.1} parent=1 // pred_check
      _
    $region11: #{tpu_custom_call.1} parent=1 // pred_check_branch
      %35 = sbr.rel (0) target = $region13
    $region12: #{tpu_custom_call.1} parent=1 // pred_region
      %s37 = ssub.s32 192, 192
      %38 = vsyncadd [#allocation5], %s37
      %s40 = sshll.u32 [#allocation6], 4
      %s41 = int_to_ptr.vmem [resolvable:$true] %s40
      %43 = dma.hbm_to_vmem [thread:$0]  %s2, 192, %s41, [#allocation5]
    $region13: #{tpu_custom_call.1} parent=1 // pred_fallthru
      _
    // Predicated region
    $region14: #{tpu_custom_call.1} parent=1 // pred_check
      _
    $region15: #{tpu_custom_call.1} parent=1 // pred_check_branch
      %45 = sbr.rel (0) target = $region17
    $region16: #{tpu_custom_call.1} parent=1 // pred_region
      %s47 = ssub.s32 128, 128
      %48 = vsyncadd [#allocation8], %s47
      %s50 = sshll.u32 [#allocation7], 4
      %s51 = int_to_ptr.vmem [resolvable:$true] %s50
      %53 = dma.hbm_to_vmem [thread:$0]  %s3, 128, %s51, [#allocation8]
    $region17: #{tpu_custom_call.1} parent=1 // pred_fallthru
      _
    // Predicated region
    $region18: #{tpu_custom_call.1} parent=1 // pred_check
      _
    $region19: #{tpu_custom_call.1} parent=1 // pred_check_branch
      %55 = sbr.rel (0) target = $region21
    $region20: #{tpu_custom_call.1} parent=1 // pred_region
      %56 = dma.done [#allocation3], 128
    $region21: #{tpu_custom_call.1} parent=1 // pred_fallthru
      _
    // Predicated region
    $region22: #{tpu_custom_call.1} parent=1 // pred_check
      _
    $region23: #{tpu_custom_call.1} parent=1 // pred_check_branch
      %58 = sbr.rel (0) target = $region25
    $region24: #{tpu_custom_call.1} parent=1 // pred_region
      %59 = dma.done [#allocation5], 10752
    $region25: #{tpu_custom_call.1} parent=1 // pred_fallthru
      _
    // Predicated region
    $region26: #{tpu_custom_call.1} parent=1 // pred_check
      _
    $region27: #{tpu_custom_call.1} parent=1 // pred_check_branch
      %61 = sbr.rel (0) target = $region29
    $region28: #{tpu_custom_call.1} parent=1 // pred_region
      %62 = dma.done [#allocation5], 192
    $region29: #{tpu_custom_call.1} parent=1 // pred_fallthru
      _
    // Predicated region
    $region30: #{tpu_custom_call.1} parent=1 // pred_check
      _
    $region31: #{tpu_custom_call.1} parent=1 // pred_check_branch
      %64 = sbr.rel (0) target = $region33
    $region32: #{tpu_custom_call.1} parent=1 // pred_region
      %65 = dma.done [#allocation8], 128
    $region33: #{tpu_custom_call.1} parent=1 // pred_fallthru
      _
    %v66 = vld [vmem:[#allocation2] sm:$0xff]
    %v67 = vld [vmem:[#allocation4] sm:$0xff]
    %v68 = vld [vmem:[#allocation4 + $0x8] sm:$0xff]
    %v69 = vld [vmem:[#allocation4 + $0x10] sm:$0xff]
    %v70 = vld [vmem:[#allocation4 + $0x18] sm:$0xff]
    %v71 = vld [vmem:[#allocation4 + $0x20] sm:$0xff]
    %v72 = vld [vmem:[#allocation4 + $0x28] sm:$0xff]
    %v73 = vld [vmem:[#allocation4 + $0x30] sm:$0xff]
    %v74 = vld [vmem:[#allocation4 + $0x38] sm:$0xff]
    %v75 = vld [vmem:[#allocation4 + $0x40] sm:$0xff]
    %v76 = vld [vmem:[#allocation4 + $0x48] sm:$0xff]
    %v77 = vld [vmem:[#allocation4 + $0x50] sm:$0xff]
    %v78 = vld [vmem:[#allocation4 + $0x58] sm:$0xff]
    %v79 = vld [vmem:[#allocation4 + $0x60] sm:$0xff]
    %v80 = vld [vmem:[#allocation4 + $0x68] sm:$0xff]
    %v81 = vld [vmem:[#allocation4 + $0x70] sm:$0xff]
    %v82 = vld [vmem:[#allocation4 + $0x78] sm:$0xff]
    %v83 = vld [vmem:[#allocation4 + $0x80] sm:$0xff]
    %v84 = vld [vmem:[#allocation4 + $0x88] sm:$0xff]
    %v85 = vld [vmem:[#allocation4 + $0x90] sm:$0xff]
    %v86 = vld [vmem:[#allocation4 + $0x98] sm:$0xff]
    %v87 = vld [vmem:[#allocation4 + $0xa0] sm:$0xff]
    %v88 = vld [vmem:[#allocation4 + $0xa8] sm:$0xff]
    %v89 = vld [vmem:[#allocation4 + $0xb0] sm:$0xff]
    %v90 = vld [vmem:[#allocation4 + $0xb8] sm:$0xff]
    %v91 = vld [vmem:[#allocation4 + $0xc0] sm:$0xff]
    %v92 = vld [vmem:[#allocation4 + $0xc8] sm:$0xff]
    %v93 = vld [vmem:[#allocation4 + $0xd0] sm:$0xff]
    %v94 = vld [vmem:[#allocation4 + $0xd8] sm:$0xff]
    %v95 = vld [vmem:[#allocation4 + $0xe0] sm:$0xff]
    %v96 = vld [vmem:[#allocation4 + $0xe8] sm:$0xff]
    %v97 = vld [vmem:[#allocation4 + $0xf0] sm:$0xff]
    %v98 = vld [vmem:[#allocation4 + $0xf8] sm:$0xff]
    %v99 = vld [vmem:[#allocation4 + $0x100] sm:$0xff]
    %v100 = vld [vmem:[#allocation4 + $0x108] sm:$0xff]
    %v101 = vld [vmem:[#allocation4 + $0x110] sm:$0xff]
    %v102 = vld [vmem:[#allocation4 + $0x118] sm:$0xff]
    %v103 = vld [vmem:[#allocation4 + $0x120] sm:$0xff]
    %v104 = vld [vmem:[#allocation4 + $0x128] sm:$0xff]
    %v105 = vld [vmem:[#allocation4 + $0x130] sm:$0xff]
    %v106 = vld [vmem:[#allocation4 + $0x138] sm:$0xff]
    %v107 = vld [vmem:[#allocation4 + $0x140] sm:$0xff]
    %v108 = vld [vmem:[#allocation4 + $0x148] sm:$0xff]
    %v109 = vld [vmem:[#allocation4 + $0x150] sm:$0xff]
    %v110 = vld [vmem:[#allocation4 + $0x158] sm:$0xff]
    %v111 = vld [vmem:[#allocation4 + $0x160] sm:$0xff]
    %v112 = vld [vmem:[#allocation4 + $0x168] sm:$0xff]
    %v113 = vld [vmem:[#allocation4 + $0x170] sm:$0xff]
    %v114 = vld [vmem:[#allocation4 + $0x178] sm:$0xff]
    %v115 = vld [vmem:[#allocation4 + $0x180] sm:$0xff]
    %v116 = vld [vmem:[#allocation4 + $0x188] sm:$0xff]
    %v117 = vld [vmem:[#allocation4 + $0x190] sm:$0xff]
    %v118 = vld [vmem:[#allocation4 + $0x198] sm:$0xff]
    %v119 = vld [vmem:[#allocation4 + $0x1a0] sm:$0xff]
    %v120 = vld [vmem:[#allocation4 + $0x1a8] sm:$0xff]
    %v121 = vld [vmem:[#allocation4 + $0x1b0] sm:$0xff]
    %v122 = vld [vmem:[#allocation4 + $0x1b8] sm:$0xff]
    %v123 = vld [vmem:[#allocation4 + $0x1c0] sm:$0xff]
    %v124 = vld [vmem:[#allocation4 + $0x1c8] sm:$0xff]
    %v125 = vld [vmem:[#allocation4 + $0x1d0] sm:$0xff]
    %v126 = vld [vmem:[#allocation4 + $0x1d8] sm:$0xff]
    %v127 = vld [vmem:[#allocation4 + $0x1e0] sm:$0xff]
    %v128 = vld [vmem:[#allocation4 + $0x1e8] sm:$0xff]
    %v129 = vld [vmem:[#allocation4 + $0x1f0] sm:$0xff]
    %v130 = vld [vmem:[#allocation4 + $0x1f8] sm:$0xff]
    %v131 = vld [vmem:[#allocation4 + $0x200] sm:$0xff]
    %v132 = vld [vmem:[#allocation4 + $0x208] sm:$0xff]
    %v133 = vld [vmem:[#allocation4 + $0x210] sm:$0xff]
    %v134 = vld [vmem:[#allocation4 + $0x218] sm:$0xff]
    %v135 = vld [vmem:[#allocation4 + $0x220] sm:$0xff]
    %v136 = vld [vmem:[#allocation4 + $0x228] sm:$0xff]
    %v137 = vld [vmem:[#allocation4 + $0x230] sm:$0xff]
    %v138 = vld [vmem:[#allocation4 + $0x238] sm:$0xff]
    %v139 = vld [vmem:[#allocation4 + $0x240] sm:$0x1]
    %v140 = vld [vmem:[#allocation4 + $0x248] sm:$0x1]
    %v141 = vld [vmem:[#allocation4 + $0x250] sm:$0x1]
    %v142 = vld [vmem:[#allocation4 + $0x258] sm:$0x1]
    %v143 = vld [vmem:[#allocation4 + $0x260] sm:$0x1]
    %v144 = vld [vmem:[#allocation4 + $0x268] sm:$0x1]
    %v145 = vld [vmem:[#allocation4 + $0x270] sm:$0x1]
    %v146 = vld [vmem:[#allocation4 + $0x278] sm:$0x1]
    %v147 = vld [vmem:[#allocation4 + $0x280] sm:$0x1]
    %v148 = vld [vmem:[#allocation4 + $0x288] sm:$0x1]
    %v149 = vld [vmem:[#allocation4 + $0x290] sm:$0x1]
    %v150 = vld [vmem:[#allocation4 + $0x298] sm:$0x1]
    %vm151 = vcmask 400384
    %v153 = vsel %vm151, %v66, 0
    %vm155 = vcmask 1040384
    %v157 = vsel %vm155, %v139, 0
    %v160 = vsel %vm155, %v140, 0
    %v163 = vsel %vm155, %v141, 0
    %v166 = vsel %vm155, %v142, 0
    %v169 = vsel %vm155, %v143, 0
    %v172 = vsel %vm155, %v144, 0
    %v175 = vsel %vm155, %v145, 0
    %v178 = vsel %vm155, %v146, 0
    %v181 = vsel %vm155, %v147, 0
    %v184 = vsel %vm155, %v148, 0
    %v187 = vsel %vm155, %v149, 0
    %v190 = vsel %vm155, %v150, 0
    %192 = vmatprep.subr.mxu0 0.0
    %193 = vmatpush1.msra.mxu0 0.0
    %194 = vmatprep.subr.mxu0 0.0
    %195 = vmatpush1.msra.mxu0 0.0
    %196 = vmatprep.subr.mxu0 0.0
    %197 = vmatpush1.msra.mxu0 0.0
    %198 = vmatprep.subr.mxu0 0.0
    %199 = vmatpush1.msra.mxu0 0.0
    %200 = vmatprep.subr.mxu0 0.0
    %201 = vmatpush1.msra.mxu0 0.0
    %202 = vmatprep.subr.mxu0 0.0
    %203 = vmatpush1.msra.mxu0 0.0
    %204 = vmatprep.subr.mxu0 0.0
    %205 = vmatpush1.msra.mxu0 0.0
    %206 = vmatprep.subr.mxu0 0.0
    %207 = vmatpush1.msra.mxu0 0.0
    %208 = vmatprep.subr.mxu0 0.0
    %209 = vmatpush1.msra.mxu0 0.0
    %210 = vmatprep.subr.mxu0 %v160
    %211 = vmatpush1.msra.mxu0 %v157
    %212 = vmatprep.subr.mxu0 %v128
    %213 = vmatpush1.msra.mxu0 %v127
    %214 = vmatprep.subr.mxu0 %v116
    %215 = vmatpush1.msra.mxu0 %v115
    %216 = vmatprep.subr.mxu0 %v104
    %217 = vmatpush1.msra.mxu0 %v103
    %218 = vmatprep.subr.mxu0 %v92
    %219 = vmatpush1.msra.mxu0 %v91
    %220 = vmatprep.subr.mxu0 %v80
    %221 = vmatpush1.msra.mxu0 %v79
    %222 = vmatprep.subr.mxu0 %v68
    %223 = vmatpush1.msra.mxu0 %v67
    %224 = vmatprep.subr.mxu0 0.0
    %225 = vmatpush2.msra.mxu0 0.0
    %226 = vmatprep.subr.mxu0 0.0
    %227 = vmatpush2.msra.mxu0 0.0
    %228 = vmatprep.subr.mxu0 0.0
    %229 = vmatpush2.msra.mxu0 0.0
    %230 = vmatprep.subr.mxu0 0.0
    %231 = vmatpush2.msra.mxu0 0.0
    %232 = vmatprep.subr.mxu0 0.0
    %233 = vmatpush2.msra.mxu0 0.0
    %234 = vmatprep.subr.mxu0 0.0
    %235 = vmatpush2.msra.mxu0 0.0
    %236 = vmatprep.subr.mxu0 0.0
    %237 = vmatpush2.msra.mxu0 0.0
    %238 = vmatprep.subr.mxu0 0.0
    %239 = vmatpush2.msra.mxu0 0.0
    %240 = vmatprep.subr.mxu0 0.0
    %241 = vmatpush2.msra.mxu0 0.0
    %242 = vmatprep.subr.mxu0 0.0
    %243 = vmatpush2.msra.mxu0 0.0
    %244 = vmatprep.subr.mxu0 0.0
    %245 = vmatpush2.msra.mxu0 0.0
    %246 = vmatprep.subr.mxu0 0.0
    %247 = vmatpush2.msra.mxu0 0.0
    %248 = vmatprep.subr.mxu0 0.0
    %249 = vmatpush2.msra.mxu0 0.0
    %250 = vmatprep.subr.mxu0 0.0
    %251 = vmatpush2.msra.mxu0 0.0
    %252 = vmatprep.subr.mxu0 0.0
    %253 = vmatpush2.msra.mxu0 0.0
    %254 = vmatprep.subr.mxu0 0.0
    %255 = vmatpush2.msra.mxu0 0.0
    %256 = vmatprep.mubr.f32.mxu0 0.0
    %257 = vmatmul.mubr.f32.gmra.mxu0 %v153
    %v258 = vpop.f32.mrf.mxu0
    %v259 = vadd.f32 0.0, %v258
    %v260 = vpop.f32.mrf.mxu0
    %v261 = vadd.f32 0.0, %v260
    %262 = vdwg.mxu0
    %263 = vmatprep.subr.mxu0 0.0
    %264 = vmatpush1.msra.mxu0 0.0
    %265 = vmatprep.subr.mxu0 0.0
    %266 = vmatpush1.msra.mxu0 0.0
    %267 = vmatprep.subr.mxu0 0.0
    %268 = vmatpush1.msra.mxu0 0.0
    %269 = vmatprep.subr.mxu0 0.0
    %270 = vmatpush1.msra.mxu0 0.0
    %271 = vmatprep.subr.mxu0 0.0
    %272 = vmatpush1.msra.mxu0 0.0
    %273 = vmatprep.subr.mxu0 0.0
    %274 = vmatpush1.msra.mxu0 0.0
    %275 = vmatprep.subr.mxu0 0.0
    %276 = vmatpush1.msra.mxu0 0.0
    %277 = vmatprep.subr.mxu0 0.0
    %278 = vmatpush1.msra.mxu0 0.0
    %279 = vmatprep.subr.mxu0 0.0
    %280 = vmatpush1.msra.mxu0 0.0
    %281 = vmatprep.subr.mxu0 %v166
    %282 = vmatpush1.msra.mxu0 %v163
    %283 = vmatprep.subr.mxu0 %v130
    %284 = vmatpush1.msra.mxu0 %v129
    %285 = vmatprep.subr.mxu0 %v118
    %286 = vmatpush1.msra.mxu0 %v117
    %287 = vmatprep.subr.mxu0 %v106
    %288 = vmatpush1.msra.mxu0 %v105
    %289 = vmatprep.subr.mxu0 %v94
    %290 = vmatpush1.msra.mxu0 %v93
    %291 = vmatprep.subr.mxu0 %v82
    %292 = vmatpush1.msra.mxu0 %v81
    %293 = vmatprep.subr.mxu0 %v70
    %294 = vmatpush1.msra.mxu0 %v69
    %295 = vmatprep.subr.mxu0 0.0
    %296 = vmatpush2.msra.mxu0 0.0
    %297 = vmatprep.subr.mxu0 0.0
    %298 = vmatpush2.msra.mxu0 0.0
    %299 = vmatprep.subr.mxu0 0.0
    %300 = vmatpush2.msra.mxu0 0.0
    %301 = vmatprep.subr.mxu0 0.0
    %302 = vmatpush2.msra.mxu0 0.0
    %303 = vmatprep.subr.mxu0 0.0
    %304 = vmatpush2.msra.mxu0 0.0
    %305 = vmatprep.subr.mxu0 0.0
    %306 = vmatpush2.msra.mxu0 0.0
    %307 = vmatprep.subr.mxu0 0.0
    %308 = vmatpush2.msra.mxu0 0.0
    %309 = vmatprep.subr.mxu0 0.0
    %310 = vmatpush2.msra.mxu0 0.0
    %311 = vmatprep.subr.mxu0 0.0
    %312 = vmatpush2.msra.mxu0 0.0
    %313 = vmatprep.subr.mxu0 0.0
    %314 = vmatpush2.msra.mxu0 0.0
    %315 = vmatprep.subr.mxu0 0.0
    %316 = vmatpush2.msra.mxu0 0.0
    %317 = vmatprep.subr.mxu0 0.0
    %318 = vmatpush2.msra.mxu0 0.0
    %319 = vmatprep.subr.mxu0 0.0
    %320 = vmatpush2.msra.mxu0 0.0
    %321 = vmatprep.subr.mxu0 0.0
    %322 = vmatpush2.msra.mxu0 0.0
    %323 = vmatprep.subr.mxu0 0.0
    %324 = vmatpush2.msra.mxu0 0.0
    %325 = vmatprep.subr.mxu0 0.0
    %326 = vmatpush2.msra.mxu0 0.0
    %327 = vmatprep.mubr.f32.mxu0 0.0
    %328 = vmatmul.mubr.f32.gmra.mxu0 %v153
    %v329 = vpop.f32.mrf.mxu0
    %v330 = vadd.f32 0.0, %v329
    %v331 = vpop.f32.mrf.mxu0
    %v332 = vadd.f32 0.0, %v331
    %333 = vdwg.mxu0
    %334 = vmatprep.subr.mxu0 0.0
    %335 = vmatpush1.msra.mxu0 0.0
    %336 = vmatprep.subr.mxu0 0.0
    %337 = vmatpush1.msra.mxu0 0.0
    %338 = vmatprep.subr.mxu0 0.0
    %339 = vmatpush1.msra.mxu0 0.0
    %340 = vmatprep.subr.mxu0 0.0
    %341 = vmatpush1.msra.mxu0 0.0
    %342 = vmatprep.subr.mxu0 0.0
    %343 = vmatpush1.msra.mxu0 0.0
    %344 = vmatprep.subr.mxu0 0.0
    %345 = vmatpush1.msra.mxu0 0.0
    %346 = vmatprep.subr.mxu0 0.0
    %347 = vmatpush1.msra.mxu0 0.0
    %348 = vmatprep.subr.mxu0 0.0
    %349 = vmatpush1.msra.mxu0 0.0
    %350 = vmatprep.subr.mxu0 0.0
    %351 = vmatpush1.msra.mxu0 0.0
    %352 = vmatprep.subr.mxu0 %v172
    %353 = vmatpush1.msra.mxu0 %v169
    %354 = vmatprep.subr.mxu0 %v132
    %355 = vmatpush1.msra.mxu0 %v131
    %356 = vmatprep.subr.mxu0 %v120
    %357 = vmatpush1.msra.mxu0 %v119
    %358 = vmatprep.subr.mxu0 %v108
    %359 = vmatpush1.msra.mxu0 %v107
    %360 = vmatprep.subr.mxu0 %v96
    %361 = vmatpush1.msra.mxu0 %v95
    %362 = vmatprep.subr.mxu0 %v84
    %363 = vmatpush1.msra.mxu0 %v83
    %364 = vmatprep.subr.mxu0 %v72
    %365 = vmatpush1.msra.mxu0 %v71
    %366 = vmatprep.subr.mxu0 0.0
    %367 = vmatpush2.msra.mxu0 0.0
    %368 = vmatprep.subr.mxu0 0.0
    %369 = vmatpush2.msra.mxu0 0.0
    %370 = vmatprep.subr.mxu0 0.0
    %371 = vmatpush2.msra.mxu0 0.0
    %372 = vmatprep.subr.mxu0 0.0
    %373 = vmatpush2.msra.mxu0 0.0
    %374 = vmatprep.subr.mxu0 0.0
    %375 = vmatpush2.msra.mxu0 0.0
    %376 = vmatprep.subr.mxu0 0.0
    %377 = vmatpush2.msra.mxu0 0.0
    %378 = vmatprep.subr.mxu0 0.0
    %379 = vmatpush2.msra.mxu0 0.0
    %380 = vmatprep.subr.mxu0 0.0
    %381 = vmatpush2.msra.mxu0 0.0
    %382 = vmatprep.subr.mxu0 0.0
    %383 = vmatpush2.msra.mxu0 0.0
    %384 = vmatprep.subr.mxu0 0.0
    %385 = vmatpush2.msra.mxu0 0.0
    %386 = vmatprep.subr.mxu0 0.0
    %387 = vmatpush2.msra.mxu0 0.0
    %388 = vmatprep.subr.mxu0 0.0
    %389 = vmatpush2.msra.mxu0 0.0
    %390 = vmatprep.subr.mxu0 0.0
    %391 = vmatpush2.msra.mxu0 0.0
    %392 = vmatprep.subr.mxu0 0.0
    %393 = vmatpush2.msra.mxu0 0.0
    %394 = vmatprep.subr.mxu0 0.0
    %395 = vmatpush2.msra.mxu0 0.0
    %396 = vmatprep.subr.mxu0 0.0
    %397 = vmatpush2.msra.mxu0 0.0
    %398 = vmatprep.mubr.f32.mxu0 0.0
    %399 = vmatmul.mubr.f32.gmra.mxu0 %v153
    %v400 = vpop.f32.mrf.mxu0
    %v401 = vadd.f32 0.0, %v400
    %v402 = vpop.f32.mrf.mxu0
    %v403 = vadd.f32 0.0, %v402
    %404 = vdwg.mxu0
    %405 = vmatprep.subr.mxu0 0.0
    %406 = vmatpush1.msra.mxu0 0.0
    %407 = vmatprep.subr.mxu0 0.0
    %408 = vmatpush1.msra.mxu0 0.0
    %409 = vmatprep.subr.mxu0 0.0
    %410 = vmatpush1.msra.mxu0 0.0
    %411 = vmatprep.subr.mxu0 0.0
    %412 = vmatpush1.msra.mxu0 0.0
    %413 = vmatprep.subr.mxu0 0.0
    %414 = vmatpush1.msra.mxu0 0.0
    %415 = vmatprep.subr.mxu0 0.0
    %416 = vmatpush1.msra.mxu0 0.0
    %417 = vmatprep.subr.mxu0 0.0
    %418 = vmatpush1.msra.mxu0 0.0
    %419 = vmatprep.subr.mxu0 0.0
    %420 = vmatpush1.msra.mxu0 0.0
    %421 = vmatprep.subr.mxu0 0.0
    %422 = vmatpush1.msra.mxu0 0.0
    %423 = vmatprep.subr.mxu0 %v178
    %424 = vmatpush1.msra.mxu0 %v175
    %425 = vmatprep.subr.mxu0 %v134
    %426 = vmatpush1.msra.mxu0 %v133
    %427 = vmatprep.subr.mxu0 %v122
    %428 = vmatpush1.msra.mxu0 %v121
    %429 = vmatprep.subr.mxu0 %v110
    %430 = vmatpush1.msra.mxu0 %v109
    %431 = vmatprep.subr.mxu0 %v98
    %432 = vmatpush1.msra.mxu0 %v97
    %433 = vmatprep.subr.mxu0 %v86
    %434 = vmatpush1.msra.mxu0 %v85
    %435 = vmatprep.subr.mxu0 %v74
    %436 = vmatpush1.msra.mxu0 %v73
    %437 = vmatprep.subr.mxu0 0.0
    %438 = vmatpush2.msra.mxu0 0.0
    %439 = vmatprep.subr.mxu0 0.0
    %440 = vmatpush2.msra.mxu0 0.0
    %441 = vmatprep.subr.mxu0 0.0
    %442 = vmatpush2.msra.mxu0 0.0
    %443 = vmatprep.subr.mxu0 0.0
    %444 = vmatpush2.msra.mxu0 0.0
    %445 = vmatprep.subr.mxu0 0.0
    %446 = vmatpush2.msra.mxu0 0.0
    %447 = vmatprep.subr.mxu0 0.0
    %448 = vmatpush2.msra.mxu0 0.0
    %449 = vmatprep.subr.mxu0 0.0
    %450 = vmatpush2.msra.mxu0 0.0
    %451 = vmatprep.subr.mxu0 0.0
    %452 = vmatpush2.msra.mxu0 0.0
    %453 = vmatprep.subr.mxu0 0.0
    %454 = vmatpush2.msra.mxu0 0.0
    %455 = vmatprep.subr.mxu0 0.0
    %456 = vmatpush2.msra.mxu0 0.0
    %457 = vmatprep.subr.mxu0 0.0
    %458 = vmatpush2.msra.mxu0 0.0
    %459 = vmatprep.subr.mxu0 0.0
    %460 = vmatpush2.msra.mxu0 0.0
    %461 = vmatprep.subr.mxu0 0.0
    %462 = vmatpush2.msra.mxu0 0.0
    %463 = vmatprep.subr.mxu0 0.0
    %464 = vmatpush2.msra.mxu0 0.0
    %465 = vmatprep.subr.mxu0 0.0
    %466 = vmatpush2.msra.mxu0 0.0
    %467 = vmatprep.subr.mxu0 0.0
    %468 = vmatpush2.msra.mxu0 0.0
    %469 = vmatprep.mubr.f32.mxu0 0.0
    %470 = vmatmul.mubr.f32.gmra.mxu0 %v153
    %v471 = vpop.f32.mrf.mxu0
    %v472 = vadd.f32 0.0, %v471
    %v473 = vpop.f32.mrf.mxu0
    %v474 = vadd.f32 0.0, %v473
    %475 = vdwg.mxu0
    %476 = vmatprep.subr.mxu0 0.0
    %477 = vmatpush1.msra.mxu0 0.0
    %478 = vmatprep.subr.mxu0 0.0
    %479 = vmatpush1.msra.mxu0 0.0
    %480 = vmatprep.subr.mxu0 0.0
    %481 = vmatpush1.msra.mxu0 0.0
    %482 = vmatprep.subr.mxu0 0.0
    %483 = vmatpush1.msra.mxu0 0.0
    %484 = vmatprep.subr.mxu0 0.0
    %485 = vmatpush1.msra.mxu0 0.0
    %486 = vmatprep.subr.mxu0 0.0
    %487 = vmatpush1.msra.mxu0 0.0
    %488 = vmatprep.subr.mxu0 0.0
    %489 = vmatpush1.msra.mxu0 0.0
    %490 = vmatprep.subr.mxu0 0.0
    %491 = vmatpush1.msra.mxu0 0.0
    %492 = vmatprep.subr.mxu0 0.0
    %493 = vmatpush1.msra.mxu0 0.0
    %494 = vmatprep.subr.mxu0 %v184
    %495 = vmatpush1.msra.mxu0 %v181
    %496 = vmatprep.subr.mxu0 %v136
    %497 = vmatpush1.msra.mxu0 %v135
    %498 = vmatprep.subr.mxu0 %v124
    %499 = vmatpush1.msra.mxu0 %v123
    %500 = vmatprep.subr.mxu0 %v112
    %501 = vmatpush1.msra.mxu0 %v111
    %502 = vmatprep.subr.mxu0 %v100
    %503 = vmatpush1.msra.mxu0 %v99
    %504 = vmatprep.subr.mxu0 %v88
    %505 = vmatpush1.msra.mxu0 %v87
    %506 = vmatprep.subr.mxu0 %v76
    %507 = vmatpush1.msra.mxu0 %v75
    %508 = vmatprep.subr.mxu0 0.0
    %509 = vmatpush2.msra.mxu0 0.0
    %510 = vmatprep.subr.mxu0 0.0
    %511 = vmatpush2.msra.mxu0 0.0
    %512 = vmatprep.subr.mxu0 0.0
    %513 = vmatpush2.msra.mxu0 0.0
    %514 = vmatprep.subr.mxu0 0.0
    %515 = vmatpush2.msra.mxu0 0.0
    %516 = vmatprep.subr.mxu0 0.0
    %517 = vmatpush2.msra.mxu0 0.0
    %518 = vmatprep.subr.mxu0 0.0
    %519 = vmatpush2.msra.mxu0 0.0
    %520 = vmatprep.subr.mxu0 0.0
    %521 = vmatpush2.msra.mxu0 0.0
    %522 = vmatprep.subr.mxu0 0.0
    %523 = vmatpush2.msra.mxu0 0.0
    %524 = vmatprep.subr.mxu0 0.0
    %525 = vmatpush2.msra.mxu0 0.0
    %526 = vmatprep.subr.mxu0 0.0
    %527 = vmatpush2.msra.mxu0 0.0
    %528 = vmatprep.subr.mxu0 0.0
    %529 = vmatpush2.msra.mxu0 0.0
    %530 = vmatprep.subr.mxu0 0.0
    %531 = vmatpush2.msra.mxu0 0.0
    %532 = vmatprep.subr.mxu0 0.0
    %533 = vmatpush2.msra.mxu0 0.0
    %534 = vmatprep.subr.mxu0 0.0
    %535 = vmatpush2.msra.mxu0 0.0
    %536 = vmatprep.subr.mxu0 0.0
    %537 = vmatpush2.msra.mxu0 0.0
    %538 = vmatprep.subr.mxu0 0.0
    %539 = vmatpush2.msra.mxu0 0.0
    %540 = vmatprep.mubr.f32.mxu0 0.0
    %541 = vmatmul.mubr.f32.gmra.mxu0 %v153
    %v542 = vpop.f32.mrf.mxu0
    %v543 = vadd.f32 0.0, %v542
    %v544 = vpop.f32.mrf.mxu0
    %v545 = vadd.f32 0.0, %v544
    %546 = vdwg.mxu0
    %547 = vmatprep.subr.mxu0 0.0
    %548 = vmatpush1.msra.mxu0 0.0
    %549 = vmatprep.subr.mxu0 0.0
    %550 = vmatpush1.msra.mxu0 0.0
    %551 = vmatprep.subr.mxu0 0.0
    %552 = vmatpush1.msra.mxu0 0.0
    %553 = vmatprep.subr.mxu0 0.0
    %554 = vmatpush1.msra.mxu0 0.0
    %555 = vmatprep.subr.mxu0 0.0
    %556 = vmatpush1.msra.mxu0 0.0
    %557 = vmatprep.subr.mxu0 0.0
    %558 = vmatpush1.msra.mxu0 0.0
    %559 = vmatprep.subr.mxu0 0.0
    %560 = vmatpush1.msra.mxu0 0.0
    %561 = vmatprep.subr.mxu0 0.0
    %562 = vmatpush1.msra.mxu0 0.0
    %563 = vmatprep.subr.mxu0 0.0
    %564 = vmatpush1.msra.mxu0 0.0
    %565 = vmatprep.subr.mxu0 %v190
    %566 = vmatpush1.msra.mxu0 %v187
    %567 = vmatprep.subr.mxu0 %v138
    %568 = vmatpush1.msra.mxu0 %v137
    %569 = vmatprep.subr.mxu0 %v126
    %570 = vmatpush1.msra.mxu0 %v125
    %571 = vmatprep.subr.mxu0 %v114
    %572 = vmatpush1.msra.mxu0 %v113
    %573 = vmatprep.subr.mxu0 %v102
    %574 = vmatpush1.msra.mxu0 %v101
    %575 = vmatprep.subr.mxu0 %v90
    %576 = vmatpush1.msra.mxu0 %v89
    %577 = vmatprep.subr.mxu0 %v78
    %578 = vmatpush1.msra.mxu0 %v77
    %579 = vmatprep.subr.mxu0 0.0
    %580 = vmatpush2.msra.mxu0 0.0
    %581 = vmatprep.subr.mxu0 0.0
    %582 = vmatpush2.msra.mxu0 0.0
    %583 = vmatprep.subr.mxu0 0.0
    %584 = vmatpush2.msra.mxu0 0.0
    %585 = vmatprep.subr.mxu0 0.0
    %586 = vmatpush2.msra.mxu0 0.0
    %587 = vmatprep.subr.mxu0 0.0
    %588 = vmatpush2.msra.mxu0 0.0
    %589 = vmatprep.subr.mxu0 0.0
    %590 = vmatpush2.msra.mxu0 0.0
    %591 = vmatprep.subr.mxu0 0.0
    %592 = vmatpush2.msra.mxu0 0.0
    %593 = vmatprep.subr.mxu0 0.0
    %594 = vmatpush2.msra.mxu0 0.0
    %595 = vmatprep.subr.mxu0 0.0
    %596 = vmatpush2.msra.mxu0 0.0
    %597 = vmatprep.subr.mxu0 0.0
    %598 = vmatpush2.msra.mxu0 0.0
    %599 = vmatprep.subr.mxu0 0.0
    %600 = vmatpush2.msra.mxu0 0.0
    %601 = vmatprep.subr.mxu0 0.0
    %602 = vmatpush2.msra.mxu0 0.0
    %603 = vmatprep.subr.mxu0 0.0
    %604 = vmatpush2.msra.mxu0 0.0
    %605 = vmatprep.subr.mxu0 0.0
    %606 = vmatpush2.msra.mxu0 0.0
    %607 = vmatprep.subr.mxu0 0.0
    %608 = vmatpush2.msra.mxu0 0.0
    %609 = vmatprep.subr.mxu0 0.0
    %610 = vmatpush2.msra.mxu0 0.0
    %611 = vmatprep.mubr.f32.mxu0 0.0
    %612 = vmatmul.mubr.f32.gmra.mxu0 %v153
    %v613 = vpop.f32.mrf.mxu0
    %v614 = vadd.f32 0.0, %v613
    %v615 = vpop.f32.mrf.mxu0
    %v616 = vadd.f32 0.0, %v615
    %617 = vdwg.mxu0
    %v618 = vld [vmem:[#allocation7] sm:$0xff]
    %620 = vrot.lane.b32.xlu0 %v618, 116
    %v621 = vpop.permute.xlu0 %620
    %v623 = vmul.f32 %v618, %v621
    %624 = vrot.lane.b32.xlu0 %v618, 117
    %v625 = vpop.permute.xlu0 %624
    %v627 = vmul.f32 %v618, %v625
    %628 = vrot.lane.b32.xlu0 %v618, 118
    %v629 = vpop.permute.xlu0 %628
    %v631 = vmul.f32 %v618, %v629
    %633 = vset.pattern.permute.xlu0 0
    %634 = vperm.xlu0 %633, %v623
    %v635 = vpop.permute.xlu0 %634
    %v637 = vmul.f32 %v635, %v259
    %v638 = vmul.f32 %v635, %v261
    %v639 = vmul.f32 %v635, %v330
    %v640 = vmul.f32 %v635, %v332
    %642 = vset.pattern.permute.xlu0 1
    %643 = vperm.xlu0 %642, %v627
    %v644 = vpop.permute.xlu0 %643
    %v646 = vmul.f32 %v644, %v401
    %v647 = vmul.f32 %v644, %v403
    %v648 = vmul.f32 %v644, %v472
    %v649 = vmul.f32 %v644, %v474
    %v650 = vadd.f32 %v637, %v646
    %v651 = vadd.f32 %v638, %v647
    %v652 = vadd.f32 %v639, %v648
    %v653 = vadd.f32 %v640, %v649
    %655 = vset.pattern.permute.xlu0 2
    %656 = vperm.xlu0 %655, %v631
    %v657 = vpop.permute.xlu0 %656
    %v659 = vmul.f32 %v657, %v543
    %v660 = vmul.f32 %v657, %v545
    %v661 = vmul.f32 %v657, %v614
    %v662 = vmul.f32 %v657, %v616
    %v663 = vadd.f32 %v650, %v659
    %v664 = vadd.f32 %v651, %v660
    %v665 = vadd.f32 %v652, %v661
    %v666 = vadd.f32 %v653, %v662
    %667 = vset.pattern.permute.xlu0 9
    %668 = vperm.xlu0 %667, %v618
    %v669 = vpop.permute.xlu0 %668
    %v671 = vadd.f32 %v663, %v669
    %v672 = vadd.f32 %v664, %v669
    %v673 = vadd.f32 %v665, %v669
    %v674 = vadd.f32 %v666, %v669
    %v675 = vld [vmem:[#allocation6] sm:$0xf]
    %v677 = vlaneseq
    %v678 = vshrl.u32 %v677, 7
    %v679 = vsub.s32 0, %v678
    %v680 = vrot.slane %v675, %v679
    %v681 = vlaneseq
    %v682 = vshrl.u32 %v681, 7
    %v683 = vsub.s32 1, %v682
    %v684 = vrot.slane %v675, %v683
    %v685 = vlaneseq
    %v686 = vshrl.u32 %v685, 7
    %v687 = vsub.s32 2, %v686
    %v688 = vrot.slane %v675, %v687
    %v689 = vlaneseq
    %v690 = vshrl.u32 %v689, 7
    %v691 = vsub.s32 3, %v690
    %v692 = vrot.slane %v675, %v691
    %v697 = vsub.f32 %v671, %v680
    %v698 = vsub.f32 %v672, %v684
    %v699 = vsub.f32 %v673, %v688
    %v700 = vsub.f32 %v674, %v692
    %v701 = vmul.f32 %v697, %v697
    %v702 = vmul.f32 %v698, %v698
    %v703 = vmul.f32 %v699, %v699
    %v704 = vmul.f32 %v700, %v700
    %705 = vrot.lane.b32.xlu0 %v618, 119
    %v706 = vpop.permute.xlu0 %705
    %v708 = vmul.f32 %v618, %v706
    %709 = vrot.lane.b32.xlu0 %v618, 120
    %v710 = vpop.permute.xlu0 %709
    %v712 = vmul.f32 %v618, %v710
    %713 = vrot.lane.b32.xlu0 %v618, 121
    %v714 = vpop.permute.xlu0 %713
    %v716 = vmul.f32 %v618, %v714
    %718 = vset.pattern.permute.xlu0 3
    %719 = vperm.xlu0 %718, %v708
    %v720 = vpop.permute.xlu0 %719
    %v722 = vmul.f32 %v720, %v259
    %v723 = vmul.f32 %v720, %v261
    %v724 = vmul.f32 %v720, %v330
    %v725 = vmul.f32 %v720, %v332
    %727 = vset.pattern.permute.xlu0 4
    %728 = vperm.xlu0 %727, %v712
    %v729 = vpop.permute.xlu0 %728
    %v731 = vmul.f32 %v729, %v401
    %v732 = vmul.f32 %v729, %v403
    %v733 = vmul.f32 %v729, %v472
    %v734 = vmul.f32 %v729, %v474
    %v735 = vadd.f32 %v722, %v731
    %v736 = vadd.f32 %v723, %v732
    %v737 = vadd.f32 %v724, %v733
    %v738 = vadd.f32 %v725, %v734
    %740 = vset.pattern.permute.xlu0 5
    %741 = vperm.xlu0 %740, %v716
    %v742 = vpop.permute.xlu0 %741
    %v744 = vmul.f32 %v742, %v543
    %v745 = vmul.f32 %v742, %v545
    %v746 = vmul.f32 %v742, %v614
    %v747 = vmul.f32 %v742, %v616
    %v748 = vadd.f32 %v735, %v744
    %v749 = vadd.f32 %v736, %v745
    %v750 = vadd.f32 %v737, %v746
    %v751 = vadd.f32 %v738, %v747
    %752 = vset.pattern.permute.xlu0 10
    %753 = vperm.xlu0 %752, %v618
    %v754 = vpop.permute.xlu0 %753
    %v756 = vadd.f32 %v748, %v754
    %v757 = vadd.f32 %v749, %v754
    %v758 = vadd.f32 %v750, %v754
    %v759 = vadd.f32 %v751, %v754
    %v760 = vld [vmem:[#allocation6 + $0x4] sm:$0xf]
    %v762 = vlaneseq
    %v763 = vshrl.u32 %v762, 7
    %v764 = vsub.s32 0, %v763
    %v765 = vrot.slane %v760, %v764
    %v766 = vlaneseq
    %v767 = vshrl.u32 %v766, 7
    %v768 = vsub.s32 1, %v767
    %v769 = vrot.slane %v760, %v768
    %v770 = vlaneseq
    %v771 = vshrl.u32 %v770, 7
    %v772 = vsub.s32 2, %v771
    %v773 = vrot.slane %v760, %v772
    %v774 = vlaneseq
    %v775 = vshrl.u32 %v774, 7
    %v776 = vsub.s32 3, %v775
    %v777 = vrot.slane %v760, %v776
    %v782 = vsub.f32 %v756, %v765
    %v783 = vsub.f32 %v757, %v769
    %v784 = vsub.f32 %v758, %v773
    %v785 = vsub.f32 %v759, %v777
    %v786 = vmul.f32 %v782, %v782
    %v787 = vmul.f32 %v783, %v783
    %v788 = vmul.f32 %v784, %v784
    %v789 = vmul.f32 %v785, %v785
    %v790 = vadd.f32 %v701, %v786
    %v791 = vadd.f32 %v702, %v787
    %v792 = vadd.f32 %v703, %v788
    %v793 = vadd.f32 %v704, %v789
    %794 = vrot.lane.b32.xlu0 %v618, 122
    %v795 = vpop.permute.xlu0 %794
    %v797 = vmul.f32 %v618, %v795
    %798 = vrot.lane.b32.xlu0 %v618, 123
    %v799 = vpop.permute.xlu0 %798
    %v801 = vmul.f32 %v618, %v799
    %802 = vrot.lane.b32.xlu0 %v618, 124
    %v803 = vpop.permute.xlu0 %802
    %v805 = vmul.f32 %v618, %v803
    %807 = vset.pattern.permute.xlu0 6
    %808 = vperm.xlu0 %807, %v797
    %v809 = vpop.permute.xlu0 %808
    %v811 = vmul.f32 %v809, %v259
    %v812 = vmul.f32 %v809, %v261
    %v813 = vmul.f32 %v809, %v330
    %v814 = vmul.f32 %v809, %v332
    %816 = vset.pattern.permute.xlu0 7
    %817 = vperm.xlu0 %816, %v801
    %v818 = vpop.permute.xlu0 %817
    %v820 = vmul.f32 %v818, %v401
    %v821 = vmul.f32 %v818, %v403
    %v822 = vmul.f32 %v818, %v472
    %v823 = vmul.f32 %v818, %v474
    %v824 = vadd.f32 %v811, %v820
    %v825 = vadd.f32 %v812, %v821
    %v826 = vadd.f32 %v813, %v822
    %v827 = vadd.f32 %v814, %v823
    %829 = vset.pattern.permute.xlu0 8
    %830 = vperm.xlu0 %829, %v805
    %v831 = vpop.permute.xlu0 %830
    %v833 = vmul.f32 %v831, %v543
    %v834 = vmul.f32 %v831, %v545
    %v835 = vmul.f32 %v831, %v614
    %v836 = vmul.f32 %v831, %v616
    %v837 = vadd.f32 %v824, %v833
    %v838 = vadd.f32 %v825, %v834
    %v839 = vadd.f32 %v826, %v835
    %v840 = vadd.f32 %v827, %v836
    %841 = vset.pattern.permute.xlu0 11
    %842 = vperm.xlu0 %841, %v618
    %v843 = vpop.permute.xlu0 %842
    %v845 = vadd.f32 %v837, %v843
    %v846 = vadd.f32 %v838, %v843
    %v847 = vadd.f32 %v839, %v843
    %v848 = vadd.f32 %v840, %v843
    %v849 = vld [vmem:[#allocation6 + $0x8] sm:$0xf]
    %v851 = vlaneseq
    %v852 = vshrl.u32 %v851, 7
    %v853 = vsub.s32 0, %v852
    %v854 = vrot.slane %v849, %v853
    %v855 = vlaneseq
    %v856 = vshrl.u32 %v855, 7
    %v857 = vsub.s32 1, %v856
    %v858 = vrot.slane %v849, %v857
    %v859 = vlaneseq
    %v860 = vshrl.u32 %v859, 7
    %v861 = vsub.s32 2, %v860
    %v862 = vrot.slane %v849, %v861
    %v863 = vlaneseq
    %v864 = vshrl.u32 %v863, 7
    %v865 = vsub.s32 3, %v864
    %v866 = vrot.slane %v849, %v865
    %v871 = vsub.f32 %v845, %v854
    %v872 = vsub.f32 %v846, %v858
    %v873 = vsub.f32 %v847, %v862
    %v874 = vsub.f32 %v848, %v866
    %v875 = vmul.f32 %v871, %v871
    %v876 = vmul.f32 %v872, %v872
    %v877 = vmul.f32 %v873, %v873
    %v878 = vmul.f32 %v874, %v874
    %v879 = vadd.f32 %v790, %v875
    %v880 = vadd.f32 %v791, %v876
    %v881 = vadd.f32 %v792, %v877
    %v882 = vadd.f32 %v793, %v878
    %v883 = vadd.f32 %v879, %v880
    %v884 = vadd.f32 %v883, %v881
    %v885 = vadd.f32 %v884, %v882
    %886 = vadd.xlane.f32.xlu0 %v885
    %v887 = vpop.xlane.xlu0 %886
    %v888 = vmul.f32 %v618, %v618
    %890 = vrot.lane.b32.xlu0 %v888, 127
    %v891 = vpop.permute.xlu0 %890
    %v893 = vadd.f32 %v888, %v891
    %894 = vrot.lane.b32.xlu0 %v888, 126
    %v895 = vpop.permute.xlu0 %894
    %v897 = vadd.f32 %v893, %v895
    %v898 = vmul.f32 %v897, 44.0
    %v899 = vsub.f32 %v887, %v898
    %v900 = vmax.f32 %v899, 0.0
    %v901 = vrsqrt.pop %v900
    %v902 = vmul.f32 %v900, %v901
    %vm903 = vcmp.eq.f32.partialorder %v900, inf
    %v904 = vsel %vm903, %v900, %v902
    %vm905 = vcmp.eq.f32.partialorder %v900, 0.0
    %v906 = vand.u32 %v900, 2147483648
    %v907 = vsel %vm905, %v906, %v904
    %909 = vrot.lane.b32.xlu0 %v907, 119
    %v910 = vpop.permute.xlu0 %909
    %vm912 = vcmask 7168
    %913 = vst.msk [vmem:[%s4] sm:$0xff] %vm912, %v910
    // Predicated region
    $region34: #{tpu_custom_call.1} parent=1 // pred_check
      _
    $region35: #{tpu_custom_call.1} parent=1 // pred_check_branch
      %915 = sbr.rel (0) target = $region37
    $region36: #{tpu_custom_call.1} parent=1 // pred_region
      _
    $region37: #{tpu_custom_call.1} parent=1 // pred_fallthru
      _
    // Predicated region
    $region38: #{tpu_custom_call.1} parent=1 // pred_check
      _
    $region39: #{tpu_custom_call.1} parent=1 // pred_check_branch
      %917 = sbr.rel (0) target = $region41
    $region40: #{tpu_custom_call.1} parent=1 // pred_region
      _
    $region41: #{tpu_custom_call.1} parent=1 // pred_fallthru
      _
    %918 = vsyncpa [#allocation3], 1
    %919 = vsyncpa [#allocation5], 1
    %920 = vsyncpa [#allocation8], 1

</llo_original>
